<compile_context>
chip_gen: v7x
topology: tpu7x:2x2x1
jax: 0.10.0
libtpu: 0.0.40
codegen_flags: <defaults>
</compile_context>

<pallas_src>
import math
import functools

import jax
import jax.numpy as jnp
from jax.experimental import pallas as pl
from jax.experimental.pallas import tpu as pltpu


# --------------------------------------------------------------- stage 1: value projection
def _value_proj_kernel(x_ref, m_ref, wv_ref, bv_ref, v_ref):
    """value = (input @ Wv + bv) * (1 - pad); stored bf16 (MXU-ready, halves HBM/VMEM)."""
    x = x_ref[0]                                               # (TIN, C) f32
    keep = 1.0 - m_ref[0]                                      # (TIN, 1) f32
    v = jnp.dot(x.astype(jnp.bfloat16), wv_ref[...],           # wv pre-cast to bf16
                preferred_element_type=jnp.float32) + bv_ref[...]
    v_ref[0] = (v * keep).astype(v_ref.dtype)


# --------------------------------------------------------------- stage 2: deformable attention
def _msda_kernel(q_ref, ref_ref, val_ref,
                 wo_ref, bo_ref, wa_ref, ba_ref, wout_ref, bout_ref,
                 o_ref, *, spatial_shapes, level_start, H, L, P, Dh, C):
    f32, bf16 = jnp.float32, jnp.bfloat16
    HP = H * P
    HLP = L * H * P

    q = q_ref[0]                                               # (TQ, C) f32
    ref2 = ref_ref[0]                                          # (TQ, 2L): [x_0..x_{L-1} | y_0..y_{L-1}]
    TQ = q.shape[0]

    # -- small linears (kept f32: they feed the coordinate / index math) ----------------
    off_lin = jnp.dot(q, wo_ref[...], preferred_element_type=f32) + bo_ref[...]   # (TQ, 2*HLP)
    aw_lin = jnp.dot(q, wa_ref[...], preferred_element_type=f32) + ba_ref[...]    # (TQ, HLP)

    # -- per-head softmax over the L*P columns, collapsed: one exp + indicator matmuls
    #    (a single global row max is valid: any per-row constant cancels per head).
    r = jax.lax.broadcasted_iota(jnp.int32, (HLP, H), 0)
    c = jax.lax.broadcasted_iota(jnp.int32, (HLP, H), 1)
    rc = r - c * P
    rt = jax.lax.broadcasted_iota(jnp.int32, (H, HLP), 0)
    ct = jax.lax.broadcasted_iota(jnp.int32, (H, HLP), 1)
    ctr = ct - rt * P
    head_ind = jnp.zeros((HLP, H), f32)                        # [col, h] = 1 iff col belongs to head h
    head_ind_t = jnp.zeros((H, HLP), f32)
    for l in range(L):
        head_ind = jnp.where((rc >= l * HP) & (rc < l * HP + P), 1.0, head_ind)
        head_ind_t = jnp.where((ctr >= l * HP) & (ctr < l * HP + P), 1.0, head_ind_t)

    e = jnp.exp(aw_lin - jnp.max(aw_lin, axis=1, keepdims=True))                  # (TQ, HLP)
    denom = jnp.dot(e, head_ind, preferred_element_type=f32)                      # (TQ, H)
    aw = e * jnp.dot(pl.reciprocal(denom, approx=True), head_ind_t,
                     preferred_element_type=f32)                                  # (TQ, HLP)

    # -- sampling-location math, vectorized over all (level, head, point) columns (f32) --
    col = jax.lax.broadcasted_iota(jnp.int32, (1, HLP), 1)
    wcol = jnp.zeros((1, HLP), f32)                            # W_l of each column
    hcol = jnp.zeros((1, HLP), f32)                            # H_l of each column
    ref_x = jnp.zeros((TQ, HLP), f32)
    ref_y = jnp.zeros((TQ, HLP), f32)
    for l, (Hl, Wl) in enumerate(spatial_shapes):
        sel = (col >= l * HP) & (col < (l + 1) * HP)
        wcol = jnp.where(sel, float(Wl), wcol)
        hcol = jnp.where(sel, float(Hl), hcol)
        ref_x = jnp.where(sel, ref2[:, l:l + 1], ref_x)
        ref_y = jnp.where(sel, ref2[:, L + l:L + l + 1], ref_y)

    # pixel coords, align_corners=False: (ref + off/size)*size - 0.5 == ref*size + off - 0.5
    ix = ref_x * wcol + off_lin[:, :HLP] - 0.5
    iy = ref_y * hcol + off_lin[:, HLP:] - 0.5
    x0 = jnp.floor(ix)
    y0 = jnp.floor(iy)
    fx = ix - x0
    fy = iy - y0

    # per-corner bilinear coefficient and in-level flat index (f32 exact below 2^24)
    corners = []
    for dy in (0, 1):
        wy = fy if dy else (1.0 - fy)
        cy = y0 + float(dy)
        vy = (cy >= 0.0) & (cy <= hcol - 1.0)
        for dx in (0, 1):
            wx = fx if dx else (1.0 - fx)
            cx = x0 + float(dx)
            ok = vy & (cx >= 0.0) & (cx <= wcol - 1.0)         # zero padding: OOB corner -> 0
            corners.append((aw * wy * wx * ok.astype(f32),      # coeff (TQ, HLP)
                            cy * wcol + cx))                    # index (TQ, HLP), within level

    # -- per-level one-hot scatter contracted against the level's value slab on the MXU --
    ci = jax.lax.broadcasted_iota(jnp.int32, (1, C), 1)
    cmasks = [((ci >= h * Dh) & (ci < (h + 1) * Dh)).astype(f32) for h in range(H)]

    val = val_ref[0]                                           # (Len_pad, C) bf16
    out_acc = jnp.zeros((TQ, C), f32)
    # TODO(synk): for large H*L*P, convert the static (h, p) unroll to lax.fori_loop.
    for l, (Hl, Wl) in enumerate(spatial_shapes):
        Sz = Hl * Wl
        v_l = val[level_start[l]:level_start[l] + Sz, :]       # (Sz, C) bf16
        iota_l = jax.lax.broadcasted_iota(jnp.int32, (TQ, Sz), 1).astype(f32)
        for h in range(H):
            s = jnp.zeros((TQ, Sz), f32)                       # per-(level, head) scatter matrix
            for p in range(P):
                cidx = (l * H + h) * P + p
                for coeff, idx in corners:
                    s = s + jnp.where(iota_l == idx[:, cidx:cidx + 1],
                                      coeff[:, cidx:cidx + 1], 0.0)
            # full-C matmul (same MXU cycles as Dh-wide for C<=128); keep head-h columns.
            g = jnp.dot(s.astype(bf16), v_l, preferred_element_type=f32)   # (TQ, C)
            out_acc = out_acc + g * cmasks[h]

    # -- output projection (lane-dense full-C result, no per-head concatenation) ----------
    o = jnp.dot(out_acc.astype(bf16), wout_ref[...], preferred_element_type=f32) + bout_ref[...]
    o_ref[0] = o.astype(o_ref.dtype)


# --------------------------------------------------------------------------------- wrapper
def ms_deform_attn_forward(params, query, reference_points, input_flatten,
                           spatial_shapes, pad_mask, n_heads, n_points):
    # TODO(synk): reference_points with last dim == 4 (box form) not implemented.
    N, Lq, C = query.shape
    Len_in = input_flatten.shape[1]
    L = len(spatial_shapes)
    H, P = n_heads, n_points
    Dh = C // H
    HLP = L * H * P

    sizes = [hh * ww for (hh, ww) in spatial_shapes]
    assert sum(sizes) == Len_in, "sum(H_l*W_l) must equal Len_in"
    level_start, acc = [], 0
    for sz in sizes:
        level_start.append(acc)
        acc += sz

    f32 = jnp.float32
    cparams = pltpu.CompilerParams(dimension_semantics=("parallel", "parallel"),
                                   vmem_limit_bytes=48 * 1024 * 1024)

    # ---------------- stage 1: value projection + padding mask (once per batch row) ------
    TIN = min(Len_in, 2048)
    Len_pad = ((Len_in + TIN - 1) // TIN) * TIN
    inp = input_flatten.astype(f32)
    mask3 = pad_mask.astype(f32)[..., None]
    # TODO(synk): (1, TIN, 1) mask block is lane-padded 128x in VMEM; acceptable here.
    if Len_pad != Len_in:
        inp = jnp.pad(inp, ((0, 0), (0, Len_pad - Len_in), (0, 0)))
        mask3 = jnp.pad(mask3, ((0, 0), (0, Len_pad - Len_in), (0, 0)), constant_values=1.0)

    value = pl.pallas_call(
        _value_proj_kernel,
        out_shape=jax.ShapeDtypeStruct((N, Len_pad, C), jnp.bfloat16),
        grid_spec=pltpu.PrefetchScalarGridSpec(
            num_scalar_prefetch=0,
            grid=(N, Len_pad // TIN),
            in_specs=[
                pl.BlockSpec((1, TIN, C), lambda n, i: (n, i, 0)),
                pl.BlockSpec((1, TIN, 1), lambda n, i: (n, i, 0)),
                pl.BlockSpec((C, C), lambda n, i: (0, 0)),
                pl.BlockSpec((1, C), lambda n, i: (0, 0)),
            ],
            out_specs=pl.BlockSpec((1, TIN, C), lambda n, i: (n, i, 0)),
        ),
        compiler_params=cparams,
    )(inp, mask3, params["wv"].astype(jnp.bfloat16), params["bv"])

    # ---------------- stage 2: deformable attention, tiled over (batch, query tiles) -----
    TQ = min(Lq, 128)
    Lq_pad = ((Lq + TQ - 1) // TQ) * TQ
    q = query.astype(f32)
    ref2 = jnp.transpose(reference_points.astype(f32), (0, 1, 3, 2)).reshape(N, Lq, 2 * L)
    if Lq_pad != Lq:
        q = jnp.pad(q, ((0, 0), (0, Lq_pad - Lq), (0, 0)))
        ref2 = jnp.pad(ref2, ((0, 0), (0, Lq_pad - Lq), (0, 0)), constant_values=0.5)

    # Reorder linear-layer columns from PyTorch's (h, l, p[, xy]) layout to ([xy,] l, h, p):
    # x/y de-interleave becomes a contiguous lane slice and each level's columns form a
    # contiguous block (pure layout plumbing on the weights, no extra compute).
    wo_k = params["wo"].reshape(C, H, L, P, 2).transpose(0, 4, 2, 1, 3).reshape(C, 2 * HLP)
    bo_k = params["bo"].reshape(1, H, L, P, 2).transpose(0, 4, 2, 1, 3).reshape(1, 2 * HLP)
    wa_k = params["wa"].reshape(C, H, L, P).transpose(0, 2, 1, 3).reshape(C, HLP)
    ba_k = params["ba"].reshape(1, H, L, P).transpose(0, 2, 1, 3).reshape(1, HLP)

    kernel = functools.partial(
        _msda_kernel,
        spatial_shapes=tuple(spatial_shapes),
        level_start=tuple(level_start),
        H=H, L=L, P=P, Dh=Dh, C=C)

    out = pl.pallas_call(
        kernel,
        out_shape=jax.ShapeDtypeStruct((N, Lq_pad, C), f32),
        grid_spec=pltpu.PrefetchScalarGridSpec(
            num_scalar_prefetch=0,
            grid=(N, Lq_pad // TQ),
            in_specs=[
                pl.BlockSpec((1, TQ, C), lambda n, i: (n, i, 0)),        # query tile
                pl.BlockSpec((1, TQ, 2 * L), lambda n, i: (n, i, 0)),    # reference points
                pl.BlockSpec((1, Len_pad, C), lambda n, i: (n, 0, 0)),   # value (const over q tiles)
                pl.BlockSpec((C, 2 * HLP), lambda n, i: (0, 0)),         # sampling_offsets W^T
                pl.BlockSpec((1, 2 * HLP), lambda n, i: (0, 0)),         # sampling_offsets b
                pl.BlockSpec((C, HLP), lambda n, i: (0, 0)),             # attention_weights W^T
                pl.BlockSpec((1, HLP), lambda n, i: (0, 0)),             # attention_weights b
                pl.BlockSpec((C, C), lambda n, i: (0, 0)),               # output_proj W^T (bf16)
                pl.BlockSpec((1, C), lambda n, i: (0, 0)),               # output_proj b
            ],
            out_specs=pl.BlockSpec((1, TQ, C), lambda n, i: (n, i, 0)),
        ),
        compiler_params=cparams,
    )(q, ref2, value, wo_k, bo_k, wa_k, ba_k,
      params["wout"].astype(jnp.bfloat16), params["bout"])

    return out[:, :Lq, :]


# --------------------------------------------------------------------------------- params
def init_params(key, d_model, n_levels, n_heads, n_points):
    """Reproduces MSDeformAttn._reset_parameters. Weights stored as (in, out)."""
    C, H, L, P = d_model, n_heads, n_levels, n_points
    k1, k2 = jax.random.split(key)
    a = math.sqrt(6.0 / (C + C))                                      # xavier_uniform
    wv = jax.random.uniform(k1, (C, C), jnp.float32, -a, a)
    wout = jax.random.uniform(k2, (C, C), jnp.float32, -a, a)
    bv = jnp.zeros((1, C), jnp.float32)
    bout = jnp.zeros((1, C), jnp.float32)
    # sampling_offsets: weight = 0, bias = ring-of-directions init
    wo = jnp.zeros((C, H * L * P * 2), jnp.float32)
    thetas = jnp.arange(H, dtype=jnp.float32) * (2.0 * math.pi / H)
    grid = jnp.stack([jnp.cos(thetas), jnp.sin(thetas)], -1)          # (H, 2)
    grid = grid / jnp.max(jnp.abs(grid), axis=-1, keepdims=True)
    grid = jnp.tile(grid[:, None, None, :], (1, L, P, 1))             # (H, L, P, 2)
    grid = grid * jnp.arange(1, P + 1, dtype=jnp.float32)[None, None, :, None]
    bo = grid.reshape(1, H * L * P * 2)
    # attention_weights: weight = 0, bias = 0  (softmax -> uniform)
    wa = jnp.zeros((C, H * L * P), jnp.float32)
    ba = jnp.zeros((1, H * L * P), jnp.float32)
    return dict(wv=wv, bv=bv, wo=wo, bo=bo, wa=wa, ba=ba, wout=wout, bout=bout)


# ----------------------------------------------------------------------- pure-JAX reference
def msdeform_attn_reference(params, spatial_shapes, query, reference_points,
                            input_flatten, pad_mask, n_heads, n_points):
    N, Lq, C = query.shape
    Len_in = input_flatten.shape[1]
    L = len(spatial_shapes)
    H, P = n_heads, n_points
    Dh = C // H
    level_start, s = [], 0
    for (Hl, Wl) in spatial_shapes:
        level_start.append(s)
        s += Hl * Wl

    value = input_flatten @ params["wv"] + params["bv"]
    value = value * (1.0 - pad_mask[..., None])
    value = value.reshape(N, Len_in, H, Dh)
    off = (query @ params["wo"] + params["bo"]).reshape(N, Lq, H, L, P, 2)
    aw = (query @ params["wa"] + params["ba"]).reshape(N, Lq, H, L * P)
    aw = jax.nn.softmax(aw, axis=-1).reshape(N, Lq, H, L, P)
    norm = jnp.array([[w, h] for (h, w) in spatial_shapes], jnp.float32)   # (L, 2) = [W, H]
    loc = reference_points[:, :, None, :, None, :] + off / norm[None, None, None, :, None, :]

    out = jnp.zeros((N, Lq, H, Dh), jnp.float32)
    b_idx = jnp.arange(N)[:, None, None, None]
    h_idx = jnp.arange(H)[None, None, :, None]
    for l, (Hl, Wl) in enumerate(spatial_shapes):
        sx = loc[:, :, :, l, :, 0] * Wl - 0.5
        sy = loc[:, :, :, l, :, 1] * Hl - 0.5
        x0, y0 = jnp.floor(sx), jnp.floor(sy)
        fx, fy = sx - x0, sy - y0
        for dy in (0, 1):
            wy = fy if dy else 1.0 - fy
            for dx in (0, 1):
                wx = fx if dx else 1.0 - fx
                cx, cy = x0 + dx, y0 + dy
                valid = ((cx >= 0) & (cx <= Wl - 1) & (cy >= 0) & (cy <= Hl - 1)).astype(jnp.float32)
                idx = jnp.clip((level_start[l] + cy * Wl + cx), 0, Len_in - 1).astype(jnp.int32)
                g = value[b_idx, idx, h_idx, :]                          # (N, Lq, H, P, Dh)
                w = (aw[:, :, :, l, :] * wx * wy * valid)[..., None]     # (N, Lq, H, P, 1)
                out = out + jnp.sum(w * g, axis=3)                       # (N, Lq, H, Dh)
    out = out.reshape(N, Lq, C)
    return out @ params["wout"] + params["bout"]


# -------------------------------------------------------------------------------------- main
if __name__ == "__main__":
    d_model, n_levels, n_heads, n_points = 32, 2, 4, 2
    spatial_shapes = [(8, 8), (4, 4)]                                    # (H_l, W_l)
    N, Lq = 2, 8
    Len_in = sum(h * w for h, w in spatial_shapes)

    key = jax.random.PRNGKey(0)
    kq, kr, kf, kw1, kw2 = jax.random.split(key, 5)
    query = jax.random.normal(kq, (N, Lq, d_model), jnp.float32)
    reference_points = jax.random.uniform(kr, (N, Lq, n_levels, 2), jnp.float32)
    input_flatten = jax.random.normal(kf, (N, Len_in, d_model), jnp.float32)
    pad_mask = jnp.zeros((N, Len_in), jnp.float32).at[1, Len_in - 6:].set(1.0)

    params = init_params(jax.random.PRNGKey(42), d_model, n_levels, n_heads, n_points)
    # Perturb the zero-initialized offset / attention weights so the softmax and the
    # data-dependent sampling paths are genuinely exercised by the check.
    params["wo"] = params["wo"] + 0.02 * jax.random.normal(kw1, params["wo"].shape)
    params["wa"] = params["wa"] + 0.50 * jax.random.normal(kw2, params["wa"].shape)

    out = ms_deform_attn_forward(params, query, reference_points, input_flatten,
                                 spatial_shapes, pad_mask, n_heads, n_points)
    out = jax.block_until_ready(out)

    ref_out = msdeform_attn_reference(params, spatial_shapes, query, reference_points,
                                      input_flatten, pad_mask, n_heads, n_points)

    assert out.shape == (N, Lq, d_model)
    assert bool(jnp.all(jnp.isfinite(out)))
    max_err = float(jnp.max(jnp.abs(out - ref_out)))
    # bf16 MXU inputs + approx reciprocal => tolerance looser than a pure-f32 comparison.
    assert max_err < 5e-2, f"mismatch vs reference: max abs err = {max_err}"
    print("KERNEL_OK")
</pallas_src>

<mosaic_0001>
module attributes {stable_mosaic.version = 11 : i64} {
  func.func @_value_proj_kernel(%arg0: i32, %arg1: i32, %arg2: memref<1x80x32xf32, #tpu.memory_space<vmem>>, %arg3: memref<1x80x1xf32, #tpu.memory_space<vmem>>, %arg4: memref<32x32xbf16, #tpu.memory_space<vmem>>, %arg5: memref<1x32xf32, #tpu.memory_space<vmem>>, %arg6: memref<1x80x32xbf16, #tpu.memory_space<vmem>>) attributes {dimension_semantics = [#tpu.dimension_semantics<parallel>, #tpu.dimension_semantics<parallel>], iteration_bounds = array<i64: 2, 1>, scalar_prefetch = 0 : i64, scratch_operands = 0 : i64, tpu.core_type = #tpu.core_type<tc>, window_params = [{transform_indices = @transform_0, window_bounds = array<i64: 1, 80, 32>}, {transform_indices = @transform_1, window_bounds = array<i64: 1, 80, 1>}, {pipeline_mode = #tpu.pipeline_mode<synchronous>, transform_indices = @transform_2, window_bounds = array<i64: 32, 32>}, {pipeline_mode = #tpu.pipeline_mode<synchronous>, transform_indices = @transform_3, window_bounds = array<i64: 1, 32>}, {transform_indices = @transform_4, window_bounds = array<i64: 1, 80, 32>}]} {
    %c0 = arith.constant 0 : index
    %c0_0 = arith.constant 0 : index
    %c0_1 = arith.constant 0 : index
    %0 = vector.load %arg2[%c0, %c0_0, %c0_1] : memref<1x80x32xf32, #tpu.memory_space<vmem>>, vector<1x80x32xf32>
    %1 = vector.shape_cast %0 : vector<1x80x32xf32> to vector<80x32xf32>
    %c0_2 = arith.constant 0 : index
    %c0_3 = arith.constant 0 : index
    %c0_4 = arith.constant 0 : index
    %2 = vector.load %arg3[%c0_2, %c0_3, %c0_4] : memref<1x80x1xf32, #tpu.memory_space<vmem>>, vector<1x80x1xf32>
    %3 = vector.shape_cast %2 : vector<1x80x1xf32> to vector<80x1xf32>
    %cst = arith.constant 1.000000e+00 : f32
    %4 = vector.broadcast %cst : f32 to vector<80x1xf32>
    %5 = arith.subf %4, %3 : vector<80x1xf32>
    %6 = arith.truncf %1 : vector<80x32xf32> to vector<80x32xbf16>
    %c0_5 = arith.constant 0 : index
    %c0_6 = arith.constant 0 : index
    %7 = vector.load %arg4[%c0_5, %c0_6] : memref<32x32xbf16, #tpu.memory_space<vmem>>, vector<32x32xbf16>
    %cst_7 = arith.constant dense<0.000000e+00> : vector<80x32xf32>
    %8 = tpu.matmul %6, %7, %cst_7 {dimension_numbers = #tpu.dot_dimension_numbers<[1], [0], [0], [1], [0, 0, 1, 1], [], []>} : vector<80x32xbf16>, vector<32x32xbf16>, vector<80x32xf32> -> vector<80x32xf32>
    %c0_8 = arith.constant 0 : index
    %c0_9 = arith.constant 0 : index
    %9 = vector.load %arg5[%c0_8, %c0_9] : memref<1x32xf32, #tpu.memory_space<vmem>>, vector<1x32xf32>
    %10 = vector.broadcast %9 : vector<1x32xf32> to vector<80x32xf32>
    %11 = arith.addf %8, %10 : vector<80x32xf32>
    %12 = vector.broadcast %5 : vector<80x1xf32> to vector<80x32xf32>
    %13 = arith.mulf %11, %12 : vector<80x32xf32>
    %14 = arith.truncf %13 : vector<80x32xf32> to vector<80x32xbf16>
    %c0_10 = arith.constant 0 : index
    %c0_11 = arith.constant 0 : index
    %c0_12 = arith.constant 0 : index
    %15 = vector.load %arg6[%c0_10, %c0_11, %c0_12] : memref<1x80x32xbf16, #tpu.memory_space<vmem>>, vector<1x80x32xbf16>
    %16 = vector.shape_cast %15 : vector<1x80x32xbf16> to vector<80x32xbf16>
    %17 = vector.shape_cast %14 : vector<80x32xbf16> to vector<1x80x32xbf16>
    tpu.vector_store %arg6[%c0_10, %c0_11, %c0_12], %17 {strides = array<i32>} : memref<1x80x32xbf16, #tpu.memory_space<vmem>>, vector<1x80x32xbf16>,
    return
  }
  func.func @transform_0(%arg0: i32, %arg1: i32) -> (i32, i32, i32) {
    %c0_i32 = arith.constant 0 : i32
    %c0_i32_0 = arith.constant 0 : i32
    return %arg0, %arg1, %c0_i32 : i32, i32, i32
  }
  func.func @transform_1(%arg0: i32, %arg1: i32) -> (i32, i32, i32) {
    %c0_i32 = arith.constant 0 : i32
    %c0_i32_0 = arith.constant 0 : i32
    return %arg0, %arg1, %c0_i32 : i32, i32, i32
  }
  func.func @transform_2(%arg0: i32, %arg1: i32) -> (i32, i32) {
    %c0_i32 = arith.constant 0 : i32
    %c0_i32_0 = arith.constant 0 : i32
    %c0_i32_1 = arith.constant 0 : i32
    return %c0_i32, %c0_i32_0 : i32, i32
  }
  func.func @transform_3(%arg0: i32, %arg1: i32) -> (i32, i32) {
    %c0_i32 = arith.constant 0 : i32
    %c0_i32_0 = arith.constant 0 : i32
    %c0_i32_1 = arith.constant 0 : i32
    return %c0_i32, %c0_i32_0 : i32, i32
  }
  func.func @transform_4(%arg0: i32, %arg1: i32) -> (i32, i32, i32) {
    %c0_i32 = arith.constant 0 : i32
    %c0_i32_0 = arith.constant 0 : i32
    return %arg0, %arg1, %c0_i32 : i32, i32, i32
  }
}

</mosaic_0001>

<llo_original>
// kernel: tpu_custom_call.1
$region0: #{tpu_custom_call.1}
  #allocation0 [shape = 'u32[]', space=smem, size = 0x4, offset = 0x4, fixed_abs, tag = 'smem constant byte address 0x4 - core index']
  #allocation1 [shape = 'u32[144,128]{1,0:T(1,128)}', space=vmem, size = 0x12000, scoped, tag = 'internal scratch']
  %s0 = inlined_call_operand.vmem [shape: f32[2,80,32], index: 0, kind: input, shape index: {}]
  %s1 = inlined_call_operand.vmem [shape: f32[2,80,1], index: 1, kind: input, shape index: {}]
  %s2 = inlined_call_operand.vmem [shape: bf16[32,32], index: 2, kind: input, shape index: {}]
  %s3 = inlined_call_operand.vmem [shape: f32[1,32], index: 3, kind: input, shape index: {}]
  %s4 = inlined_call_operand.vmem [shape: bf16[2,80,32], index: 4, kind: output, shape index: {}]
  %s5 = sld [smem:[#allocation0]]
  $region49: #{tpu_custom_call.1} parent=0
    _
  %s7 = ssub.s32 1, %s5
  %s8 = scalar_select 0, %s7, %s5
  loop: start=0, step=1, limit=4
  $region2: #{tpu_custom_call.1} parent=0 // loop_pre_header
    _
  $region3: #{tpu_custom_call.1} parent=0 // loop_header
    %s10 = sphi 0, %s14
    %p11 = scmp.ge.s32.totalorder %s10, 4
    %s17 = sphi 0, %s29
    %s18 = sphi 0, %s25
    %s19 = sphi 0, %s17
    %s20 = sphi 0, %s18
    %s21 = sphi 0, %s19
    %s22 = sphi 0, %s20
    %s34 = sphi 0, %s36
    %s37 = sphi 0, %s34
    %s38 = sphi 0, %s37
    %s54 = sphi 0, %s38
    %s62 = sphi 0, %s64
    %s65 = sphi 0, %s62
    %s66 = sphi 0, %s65
    %s82 = sphi 0, %s66
    %s86 = sphi 0, %s86
    %s88 = sphi 0, %s86
    %s89 = sphi 0, %s88
    %s103 = sphi 0, %s89
    %s107 = sphi 0, %s107
    %s109 = sphi 0, %s107
    %s110 = sphi 0, %s109
    %s124 = sphi 0, %s110
    %s132 = sphi 0, %s134
    %s135 = sphi 0, %s132
    %s136 = sphi 0, %s135
    %s152 = sphi 0, %s136
  $region4: #{tpu_custom_call.1} parent=0 // loop_header_branch
    %13 = sbr.rel (%p11) target = $region8
  $region5: #{tpu_custom_call.1} parent=0 // loop_body
    %s15 = ssub.s32 %s10, 1
    %s16 = ssub.s32 %s10, 2
    %s23 = sadd.s32 1, %s18
    %p24 = scmp.ge.s32.totalorder %s23, 1
    %s25 = scalar_select %p24, 0, %s23
    %s26 = sadd.s32 1, %s17
    %s27 = scalar_select %p24, %s26, %s17
    %p28 = scmp.ge.s32.totalorder %s27, 2
    %s29 = scalar_select %p28, 0, %s27
    %s30 = ssub.s32 %s17, %s29
    %s31 = ssub.s32 %s18, %s25
    %s32 = sor.u32 %s30, %s31
    %p33 = scmp.eq.s32.totalorder %s32, 0
    %s35 = sadd.s32 %s34, 1
    %s36 = scalar_select %p33, %s34, %s35
    %p39 = pneg %p33
    %p40 = scmp.eq.s32.totalorder %s10, 1
    %p41 = por %p39, %p40
    %p42 = scmp.ne.s32.totalorder %s34, %s37
    %p43 = scmp.eq.s32.totalorder %s10, 0
    %p44 = por %p42, %p43
    %p45 = scmp.ne.s32.totalorder %s34, %s37
    %p46 = scmp.eq.s32.totalorder %s15, 1
    %p47 = por %p45, %p46
    %p48 = scmp.ne.s32.totalorder %s37, %s38
    %p49 = scmp.eq.s32.totalorder %s15, 0
    %p50 = por %p48, %p49
    %p51 = scmp.ne.s32.totalorder %s37, %s38
    %p52 = scmp.eq.s32.totalorder %s16, 1
    %p53 = por %p51, %p52
    %p55 = scmp.ne.s32.totalorder %s38, %s54
    %p56 = scmp.eq.s32.totalorder %s16, 0
    %p57 = por %p55, %p56
    %s58 = ssub.s32 %s17, %s29
    %s59 = ssub.s32 %s18, %s25
    %s60 = sor.u32 %s58, %s59
    %p61 = scmp.eq.s32.totalorder %s60, 0
    %s63 = sadd.s32 %s62, 1
    %s64 = scalar_select %p61, %s62, %s63
    %p67 = pneg %p61
    %p68 = scmp.eq.s32.totalorder %s10, 1
    %p69 = por %p67, %p68
    %p70 = scmp.ne.s32.totalorder %s62, %s65
    %p71 = scmp.eq.s32.totalorder %s10, 0
    %p72 = por %p70, %p71
    %p73 = scmp.ne.s32.totalorder %s62, %s65
    %p74 = scmp.eq.s32.totalorder %s15, 1
    %p75 = por %p73, %p74
    %p76 = scmp.ne.s32.totalorder %s65, %s66
    %p77 = scmp.eq.s32.totalorder %s15, 0
    %p78 = por %p76, %p77
    %p79 = scmp.ne.s32.totalorder %s65, %s66
    %p80 = scmp.eq.s32.totalorder %s16, 1
    %p81 = por %p79, %p80
    %p83 = scmp.ne.s32.totalorder %s66, %s82
    %p84 = scmp.eq.s32.totalorder %s16, 0
    %p85 = por %p83, %p84
    %s87 = sadd.s32 %s86, 1
    %p90 = scmp.eq.s32.totalorder %s10, 1
    %p91 = scmp.ne.s32.totalorder %s86, %s88
    %p92 = scmp.eq.s32.totalorder %s10, 0
    %p93 = por %p91, %p92
    %p94 = scmp.ne.s32.totalorder %s86, %s88
    %p95 = scmp.eq.s32.totalorder %s15, 1
    %p96 = por %p94, %p95
    %p97 = scmp.ne.s32.totalorder %s88, %s89
    %p98 = scmp.eq.s32.totalorder %s15, 0
    %p99 = por %p97, %p98
    %p100 = scmp.ne.s32.totalorder %s88, %s89
    %p101 = scmp.eq.s32.totalorder %s16, 1
    %p102 = por %p100, %p101
    %p104 = scmp.ne.s32.totalorder %s89, %s103
    %p105 = scmp.eq.s32.totalorder %s16, 0
    %p106 = por %p104, %p105
    %s108 = sadd.s32 %s107, 1
    %p111 = scmp.eq.s32.totalorder %s10, 1
    %p112 = scmp.ne.s32.totalorder %s107, %s109
    %p113 = scmp.eq.s32.totalorder %s10, 0
    %p114 = por %p112, %p113
    %p115 = scmp.ne.s32.totalorder %s107, %s109
    %p116 = scmp.eq.s32.totalorder %s15, 1
    %p117 = por %p115, %p116
    %p118 = scmp.ne.s32.totalorder %s109, %s110
    %p119 = scmp.eq.s32.totalorder %s15, 0
    %p120 = por %p118, %p119
    %p121 = scmp.ne.s32.totalorder %s109, %s110
    %p122 = scmp.eq.s32.totalorder %s16, 1
    %p123 = por %p121, %p122
    %p125 = scmp.ne.s32.totalorder %s110, %s124
    %p126 = scmp.eq.s32.totalorder %s16, 0
    %p127 = por %p125, %p126
    %s128 = ssub.s32 %s17, %s29
    %s129 = ssub.s32 %s18, %s25
    %s130 = sor.u32 %s128, %s129
    %p131 = scmp.eq.s32.totalorder %s130, 0
    %s133 = sadd.s32 %s132, 1
    %s134 = scalar_select %p131, %s132, %s133
    %p137 = pneg %p131
    %p138 = scmp.eq.s32.totalorder %s10, 1
    %p139 = por %p137, %p138
    %p140 = scmp.ne.s32.totalorder %s132, %s135
    %p141 = scmp.eq.s32.totalorder %s10, 0
    %p142 = por %p140, %p141
    %p143 = scmp.ne.s32.totalorder %s132, %s135
    %p144 = scmp.eq.s32.totalorder %s15, 1
    %p145 = por %p143, %p144
    %p146 = scmp.ne.s32.totalorder %s135, %s136
    %p147 = scmp.eq.s32.totalorder %s15, 0
    %p148 = por %p146, %p147
    %p149 = scmp.ne.s32.totalorder %s135, %s136
    %p150 = scmp.eq.s32.totalorder %s16, 1
    %p151 = por %p149, %p150
    %p153 = scmp.ne.s32.totalorder %s136, %s152
    %p154 = scmp.eq.s32.totalorder %s16, 0
    %p155 = por %p153, %p154
    %p156 = scmp.le.s32.totalorder 1, %s10
    %p157 = scmp.lt.s32.totalorder %s10, 3
    %p158 = pnand %p156, %p157
    %p159 = pneg %p158
    // Predicated region
    $region9: #{tpu_custom_call.1} parent=5 // pred_check
      _
    $region10: #{tpu_custom_call.1} parent=5 // pred_check_branch
      %161 = sbr.rel (%p158) target = $region12
    $region11: #{tpu_custom_call.1} parent=5 // pred_region
      %s162 = ssub.s32 %s10, 1
      // Predicated region
      $region13: #{tpu_custom_call.1} parent=11 // pred_check
        %p163 = pneg %p99
      $region14: #{tpu_custom_call.1} parent=11 // pred_check_branch
        %165 = sbr.rel (%p163) target = $region16
      $region15: #{tpu_custom_call.1} parent=11 // pred_region
        _
      $region16: #{tpu_custom_call.1} parent=11 // pred_fallthru
        _
      // Predicated region
      $region17: #{tpu_custom_call.1} parent=11 // pred_check
        %p166 = pneg %p120
      $region18: #{tpu_custom_call.1} parent=11 // pred_check_branch
        %168 = sbr.rel (%p166) target = $region20
      $region19: #{tpu_custom_call.1} parent=11 // pred_region
        _
      $region20: #{tpu_custom_call.1} parent=11 // pred_fallthru
        _
    $region12: #{tpu_custom_call.1} parent=5 // pred_fallthru
      _
    %p169 = scmp.lt.s32.totalorder %s10, 2
    // Predicated region
    $region21: #{tpu_custom_call.1} parent=5 // pred_check
      %p170 = pneg %p169
    $region22: #{tpu_custom_call.1} parent=5 // pred_check_branch
      %172 = sbr.rel (%p170) target = $region24
    $region23: #{tpu_custom_call.1} parent=5 // pred_region
      // Predicated region
      $region25: #{tpu_custom_call.1} parent=23 // pred_check
        %p173 = pneg %p44
      $region26: #{tpu_custom_call.1} parent=23 // pred_check_branch
        %175 = sbr.rel (%p173) target = $region28
      $region27: #{tpu_custom_call.1} parent=23 // pred_region
        %s176 = smul.u32 10, %s18
        %p177 = scmp.lt.s32.totalorder %s17, 1
        %s178 = scalar_select %p177, %s17, 1
        %p179 = scmp.lt.s32.totalorder %s176, 9
        %s180 = scalar_select %p179, %s176, 9
        %s181 = smul.addr %s178, 10
        %s182 = sadd.s32 %s180, %s181
        %s183 = smul.addr %s182, 8
        %s184 = scalar_lea.vmem %s0, %s183
        %s185 = smul.u32 10, %s18
      $region28: #{tpu_custom_call.1} parent=23 // pred_fallthru
        _
      // Predicated region
      $region29: #{tpu_custom_call.1} parent=23 // pred_check
        %p186 = pneg %p72
      $region30: #{tpu_custom_call.1} parent=23 // pred_check_branch
        %188 = sbr.rel (%p186) target = $region32
      $region31: #{tpu_custom_call.1} parent=23 // pred_region
        %s189 = smul.u32 10, %s18
        %p190 = scmp.lt.s32.totalorder %s17, 1
        %s191 = scalar_select %p190, %s17, 1
        %p192 = scmp.lt.s32.totalorder %s189, 9
        %s193 = scalar_select %p192, %s189, 9
        %s194 = smul.addr %s191, 10
        %s195 = sadd.s32 %s193, %s194
        %s196 = smul.addr %s195, 8
        %s197 = scalar_lea.vmem %s1, %s196
        %s198 = smul.u32 10, %s18
      $region32: #{tpu_custom_call.1} parent=23 // pred_fallthru
        _
    $region24: #{tpu_custom_call.1} parent=5 // pred_fallthru
      _
    %p199 = scmp.le.s32.totalorder 1, %s10
    %p200 = scmp.lt.s32.totalorder %s10, 3
    %p201 = pnand %p199, %p200
    %p202 = pneg %p201
    // Predicated region
    $region33: #{tpu_custom_call.1} parent=5 // pred_check
      _
    $region34: #{tpu_custom_call.1} parent=5 // pred_check_branch
      %204 = sbr.rel (%p201) target = $region36
    $region35: #{tpu_custom_call.1} parent=5 // pred_region
      %s205 = ssub.s32 %s10, 1
      %s206 = smul.u32 10, %s20
      %p207 = scmp.lt.s32.totalorder %s19, 1
      %s208 = scalar_select %p207, %s19, 1
      %p209 = scmp.lt.s32.totalorder %s206, 9
      %s210 = scalar_select %p209, %s206, 9
      %s211 = smul.addr %s208, 10
      %s212 = sadd.s32 %s210, %s211
      %s213 = smul.addr %s212, 8
      %s214 = scalar_lea.vmem %s0, %s213
      %p215 = pneg %p50
      %p216 = pneg %p47
      %s217 = smul.u32 10, %s20
      %p218 = scmp.lt.s32.totalorder %s19, 1
      %s219 = scalar_select %p218, %s19, 1
      %p220 = scmp.lt.s32.totalorder %s217, 9
      %s221 = scalar_select %p220, %s217, 9
      %s222 = smul.addr %s219, 10
      %s223 = sadd.s32 %s221, %s222
      %s224 = smul.addr %s223, 8
      %s225 = scalar_lea.vmem %s1, %s224
      %p226 = pneg %p78
      %p227 = pneg %p75
      %p228 = pneg %p99
      %p229 = pneg %p96
      %p230 = pneg %p120
      %p231 = pneg %p117
      %p232 = pneg %p148
      %p233 = pneg %p145
      %s234 = smul.u32 10, %s20
      %p235 = scmp.lt.s32.totalorder %s19, 1
      %s236 = scalar_select %p235, %s19, 1
      %p237 = scmp.lt.s32.totalorder %s234, 9
      %s238 = scalar_select %p237, %s234, 9
      %s239 = smul.addr %s236, 10
      %s240 = sadd.s32 %s238, %s239
      %s241 = smul.addr %s240, 4
      %s242 = scalar_lea.vmem %s4, %s241
      %s243 = smul.u32 10, %s20
      %p244 = scmp.lt.s32.totalorder %s19, 1
      %s245 = scalar_select %p244, %s19, 1
      %p246 = scmp.lt.s32.totalorder %s243, 9
      %s247 = scalar_select %p246, %s243, 9
      %s248 = smul.addr %s245, 10
      %s249 = sadd.s32 %s247, %s248
      %s250 = smul.addr %s249, 8
      %s251 = scalar_lea.vmem %s0, %s250
      %s252 = smul.u32 10, %s20
      %s253 = smul.u32 10, %s20
      %p254 = scmp.lt.s32.totalorder %s19, 1
      %s255 = scalar_select %p254, %s19, 1
      %p256 = scmp.lt.s32.totalorder %s253, 9
      %s257 = scalar_select %p256, %s253, 9
      %s258 = smul.addr %s255, 10
      %s259 = sadd.s32 %s257, %s258
      %s260 = smul.addr %s259, 8
      %s261 = scalar_lea.vmem %s1, %s260
      %s262 = smul.u32 10, %s20
      %s263 = smul.u32 10, %s20
      %p264 = scmp.lt.s32.totalorder %s19, 1
      %s265 = scalar_select %p264, %s19, 1
      %p266 = scmp.lt.s32.totalorder %s263, 9
      %s267 = scalar_select %p266, %s263, 9
      %s268 = smul.addr %s265, 10
      %s269 = sadd.s32 %s267, %s268
      %s270 = smul.addr %s269, 4
      %s271 = scalar_lea.vmem %s4, %s270
      %s272 = smul.u32 10, %s20
      %v274 = vld [vmem:[%s251] sm:$0xff]
      %v275 = vld [vmem:[%s251 + $0x8] sm:$0xff]
      %v276 = vld [vmem:[%s251 + $0x10] sm:$0xff]
      %v277 = vld [vmem:[%s251 + $0x18] sm:$0xff]
      %v278 = vld [vmem:[%s251 + $0x20] sm:$0xff]
      %v279 = vld [vmem:[%s251 + $0x28] sm:$0xff]
      %v280 = vld [vmem:[%s251 + $0x30] sm:$0xff]
      %v281 = vld [vmem:[%s251 + $0x38] sm:$0xff]
      %v282 = vld [vmem:[%s251 + $0x40] sm:$0xff]
      %v283 = vld [vmem:[%s251 + $0x48] sm:$0xff]
      %v284 = vld [vmem:[%s261] sm:$0xff]
      %v285 = vld [vmem:[%s261 + $0x8] sm:$0xff]
      %v286 = vld [vmem:[%s261 + $0x10] sm:$0xff]
      %v287 = vld [vmem:[%s261 + $0x18] sm:$0xff]
      %v288 = vld [vmem:[%s261 + $0x20] sm:$0xff]
      %v289 = vld [vmem:[%s261 + $0x28] sm:$0xff]
      %v290 = vld [vmem:[%s261 + $0x30] sm:$0xff]
      %v291 = vld [vmem:[%s261 + $0x38] sm:$0xff]
      %v292 = vld [vmem:[%s261 + $0x40] sm:$0xff]
      %v293 = vld [vmem:[%s261 + $0x48] sm:$0xff]
      %v294 = vsub.f32 1.0, %v284
      %v295 = vsub.f32 1.0, %v285
      %v296 = vsub.f32 1.0, %v286
      %v297 = vsub.f32 1.0, %v287
      %v298 = vsub.f32 1.0, %v288
      %v299 = vsub.f32 1.0, %v289
      %v300 = vsub.f32 1.0, %v290
      %v301 = vsub.f32 1.0, %v291
      %v302 = vsub.f32 1.0, %v292
      %v303 = vsub.f32 1.0, %v293
      %v304 = vpack.c.bf16 %v275, %v274
      %v305 = vpack.c.bf16 %v277, %v276
      %v306 = vpack.c.bf16 %v279, %v278
      %v307 = vpack.c.bf16 %v281, %v280
      %v308 = vpack.c.bf16 %v283, %v282
      %v309 = vld [vmem:[%s2] sm:$0xf]
      %v310 = vld [vmem:[%s2 + $0x4] sm:$0xf]
      %v311 = vld [vmem:[%s2 + $0x8] sm:$0xf]
      %v312 = vld [vmem:[%s2 + $0xc] sm:$0xf]
      %v313 = vld [vmem:[%s3] sm:$0x1]
      %v315 = vlaneseq
      %v316 = vshrl.u32 %v315, 7
      %v317 = vsub.s32 0, %v316
      %v318 = vrot.slane %v313, %v317
      %v324 = vunpack.c.l.b16 %v309
      %v325 = vunpack.c.l.b16 %v310
      %v326 = vunpack.c.l.b16 %v311
      %v327 = vunpack.c.l.b16 %v312
      %v328 = vpack.c.b16 %v325, %v324
      %v329 = vpack.c.b16 %v327, %v326
      %vm332 = vcmask 261120
      %v334 = vsel %vm332, %v304, 0
      %v337 = vsel %vm332, %v305, 0
      %v340 = vsel %vm332, %v306, 0
      %v343 = vsel %vm332, %v307, 0
      %v346 = vsel %vm332, %v308, 0
      %348 = vmatprep.subr.bf16.mxu0 0
      %349 = vmatpush1.bf16.msra.mxu0 %v328
      %350 = vmatprep.subr.bf16.mxu0 0
      %351 = vmatpush1.bf16.msra.mxu0 %v329
      %352 = vmatprep.subr.bf16.mxu0 0
      %353 = vmatpush1.bf16.msra.mxu0 0
      %354 = vmatprep.subr.bf16.mxu0 0
      %355 = vmatpush1.bf16.msra.mxu0 0
      %356 = vmatprep.subr.bf16.mxu0 0
      %357 = vmatpush1.bf16.msra.mxu0 0
      %358 = vmatprep.subr.bf16.mxu0 0
      %359 = vmatpush1.bf16.msra.mxu0 0
      %360 = vmatprep.subr.bf16.mxu0 0
      %361 = vmatpush1.bf16.msra.mxu0 0
      %362 = vmatprep.subr.bf16.mxu0 0
      %363 = vmatpush1.bf16.msra.mxu0 0
      %364 = vmatprep.subr.bf16.mxu0 0
      %365 = vmatpush1.bf16.msra.mxu0 0
      %366 = vmatprep.subr.bf16.mxu0 0
      %367 = vmatpush1.bf16.msra.mxu0 0
      %368 = vmatprep.subr.bf16.mxu0 0
      %369 = vmatpush1.bf16.msra.mxu0 0
      %370 = vmatprep.subr.bf16.mxu0 0
      %371 = vmatpush1.bf16.msra.mxu0 0
      %372 = vmatprep.subr.bf16.mxu0 0
      %373 = vmatpush1.bf16.msra.mxu0 0
      %374 = vmatprep.subr.bf16.mxu0 0
      %375 = vmatpush1.bf16.msra.mxu0 0
      %376 = vmatprep.subr.bf16.mxu0 0
      %377 = vmatpush1.bf16.msra.mxu0 0
      %378 = vmatprep.subr.bf16.mxu0 0
      %379 = vmatpush1.bf16.msra.mxu0 0
      %380 = vmatprep.mubr.bf16.mxu0 0
      %381 = vmatmul.mubr.bf16.gmra.mrb[0].mxu0 %v334
      %v382 = vpop.f32.mrb[0].mxu0
      %v383 = vadd.f32 %v318, %v382
      %v384 = vpop.f32.mrb[0].mxu0
      %v385 = vpop.f32.mrb[0].mxu0
      %v386 = vadd.f32 %v318, %v385
      %v387 = vpop.f32.mrb[0].mxu0
      %388 = vmatprep.mubr.bf16.mxu0 0
      %389 = vmatmul.mubr.bf16.gmra.mrb[0].mxu0 %v337
      %v390 = vpop.f32.mrb[0].mxu0
      %v391 = vadd.f32 %v318, %v390
      %v392 = vpop.f32.mrb[0].mxu0
      %v393 = vpop.f32.mrb[0].mxu0
      %v394 = vadd.f32 %v318, %v393
      %v395 = vpop.f32.mrb[0].mxu0
      %396 = vmatprep.mubr.bf16.mxu0 0
      %397 = vmatmul.mubr.bf16.gmra.mrb[0].mxu0 %v340
      %v398 = vpop.f32.mrb[0].mxu0
      %v399 = vadd.f32 %v318, %v398
      %v400 = vpop.f32.mrb[0].mxu0
      %v401 = vpop.f32.mrb[0].mxu0
      %v402 = vadd.f32 %v318, %v401
      %v403 = vpop.f32.mrb[0].mxu0
      %404 = vmatprep.mubr.bf16.mxu0 0
      %405 = vmatmul.mubr.bf16.gmra.mrb[0].mxu0 %v343
      %v406 = vpop.f32.mrb[0].mxu0
      %v407 = vadd.f32 %v318, %v406
      %v408 = vpop.f32.mrb[0].mxu0
      %v409 = vpop.f32.mrb[0].mxu0
      %v410 = vadd.f32 %v318, %v409
      %v411 = vpop.f32.mrb[0].mxu0
      %412 = vmatprep.mubr.bf16.mxu0 0
      %413 = vmatmul.mubr.bf16.gmra.mrb[0].mxu0 %v346
      %v414 = vpop.f32.mrb[0].mxu0
      %v415 = vadd.f32 %v318, %v414
      %v416 = vpop.f32.mrb[0].mxu0
      %v417 = vpop.f32.mrb[0].mxu0
      %v418 = vadd.f32 %v318, %v417
      %v419 = vpop.f32.mrb[0].mxu0
      %420 = vdwg.mxu0
      %422 = vset.pattern.permute.xlu0 0
      %423 = vperm.xlu0 %422, %v294
      %v424 = vpop.permute.xlu0 %423
      %427 = vset.pattern.permute.xlu0 0
      %428 = vperm.xlu0 %427, %v295
      %v429 = vpop.permute.xlu0 %428
      %432 = vset.pattern.permute.xlu0 0
      %433 = vperm.xlu0 %432, %v296
      %v434 = vpop.permute.xlu0 %433
      %437 = vset.pattern.permute.xlu0 0
      %438 = vperm.xlu0 %437, %v297
      %v439 = vpop.permute.xlu0 %438
      %442 = vset.pattern.permute.xlu0 0
      %443 = vperm.xlu0 %442, %v298
      %v444 = vpop.permute.xlu0 %443
      %447 = vset.pattern.permute.xlu0 0
      %448 = vperm.xlu0 %447, %v299
      %v449 = vpop.permute.xlu0 %448
      %452 = vset.pattern.permute.xlu0 0
      %453 = vperm.xlu0 %452, %v300
      %v454 = vpop.permute.xlu0 %453
      %457 = vset.pattern.permute.xlu0 0
      %458 = vperm.xlu0 %457, %v301
      %v459 = vpop.permute.xlu0 %458
      %462 = vset.pattern.permute.xlu0 0
      %463 = vperm.xlu0 %462, %v302
      %v464 = vpop.permute.xlu0 %463
      %467 = vset.pattern.permute.xlu0 0
      %468 = vperm.xlu0 %467, %v303
      %v469 = vpop.permute.xlu0 %468
      %v471 = vmul.f32 %v383, %v424
      %v472 = vmul.f32 %v386, %v429
      %v473 = vmul.f32 %v391, %v434
      %v474 = vmul.f32 %v394, %v439
      %v475 = vmul.f32 %v399, %v444
      %v476 = vmul.f32 %v402, %v449
      %v477 = vmul.f32 %v407, %v454
      %v478 = vmul.f32 %v410, %v459
      %v479 = vmul.f32 %v415, %v464
      %v480 = vmul.f32 %v418, %v469
      %v481 = vpack.c.bf16 %v472, %v471
      %v482 = vpack.c.bf16 %v474, %v473
      %v483 = vpack.c.bf16 %v476, %v475
      %v484 = vpack.c.bf16 %v478, %v477
      %v485 = vpack.c.bf16 %v480, %v479
      %v491 = vunpack.c.l.b16 %v481
      %v492 = vunpack.c.h.b16 %v481
      %v493 = vunpack.c.l.b16 %v482
      %v494 = vunpack.c.h.b16 %v482
      %v495 = vunpack.c.l.b16 %v483
      %v496 = vunpack.c.h.b16 %v483
      %v497 = vunpack.c.l.b16 %v484
      %v498 = vunpack.c.h.b16 %v484
      %v499 = vunpack.c.l.b16 %v485
      %v500 = vunpack.c.h.b16 %v485
      %v501 = vpack.c.b16 %v491, %v491
      %v502 = vpack.c.b16 %v492, %v492
      %v503 = vpack.c.b16 %v493, %v493
      %v504 = vpack.c.b16 %v494, %v494
      %v505 = vpack.c.b16 %v495, %v495
      %v506 = vpack.c.b16 %v496, %v496
      %v507 = vpack.c.b16 %v497, %v497
      %v508 = vpack.c.b16 %v498, %v498
      %v509 = vpack.c.b16 %v499, %v499
      %v510 = vpack.c.b16 %v500, %v500
      %vm521 = vcmask 257024
      %522 = vst.msk [vmem:[%s271] sm:$0xf] %vm521, %v501
      %523 = vst.msk [vmem:[%s271 + $0x4] sm:$0xf] %vm521, %v502
      %524 = vst.msk [vmem:[%s271 + $0x8] sm:$0xf] %vm521, %v503
      %525 = vst.msk [vmem:[%s271 + $0xc] sm:$0xf] %vm521, %v504
      %526 = vst.msk [vmem:[%s271 + $0x10] sm:$0xf] %vm521, %v505
      %527 = vst.msk [vmem:[%s271 + $0x14] sm:$0xf] %vm521, %v506
      %528 = vst.msk [vmem:[%s271 + $0x18] sm:$0xf] %vm521, %v507
      %529 = vst.msk [vmem:[%s271 + $0x1c] sm:$0xf] %vm521, %v508
      %530 = vst.msk [vmem:[%s271 + $0x20] sm:$0xf] %vm521, %v509
      %531 = vst.msk [vmem:[%s271 + $0x24] sm:$0xf] %vm521, %v510
      %s532 = smul.u32 10, %s20
      %p533 = scmp.lt.s32.totalorder %s19, 1
      %s534 = scalar_select %p533, %s19, 1
      %p535 = scmp.lt.s32.totalorder %s532, 9
      %s536 = scalar_select %p535, %s532, 9
      %s537 = smul.addr %s534, 10
      %s538 = sadd.s32 %s536, %s537
      %s539 = smul.addr %s538, 4
      %s540 = scalar_lea.vmem %s4, %s539
      // Predicated region
      $region37: #{tpu_custom_call.1} parent=35 // pred_check
        %p541 = pneg %p145
      $region38: #{tpu_custom_call.1} parent=35 // pred_check_branch
        %543 = sbr.rel (%p541) target = $region40
      $region39: #{tpu_custom_call.1} parent=35 // pred_region
        %s544 = smul.u32 10, %s20
      $region40: #{tpu_custom_call.1} parent=35 // pred_fallthru
        _
    $region36: #{tpu_custom_call.1} parent=5 // pred_fallthru
      _
    %p545 = scmp.le.s32.totalorder 2, %s10
    // Predicated region
    $region41: #{tpu_custom_call.1} parent=5 // pred_check
      %p546 = pneg %p545
    $region42: #{tpu_custom_call.1} parent=5 // pred_check_branch
      %548 = sbr.rel (%p546) target = $region44
    $region43: #{tpu_custom_call.1} parent=5 // pred_region
      %s549 = ssub.s32 %s10, 2
      // Predicated region
      $region45: #{tpu_custom_call.1} parent=43 // pred_check
        %p550 = pneg %p151
      $region46: #{tpu_custom_call.1} parent=43 // pred_check_branch
        %552 = sbr.rel (%p550) target = $region48
      $region47: #{tpu_custom_call.1} parent=43 // pred_region
        %s553 = smul.u32 10, %s22
        %p554 = scmp.lt.s32.totalorder %s21, 1
        %s555 = scalar_select %p554, %s21, 1
        %p556 = scmp.lt.s32.totalorder %s553, 9
        %s557 = scalar_select %p556, %s553, 9
        %s558 = smul.addr %s555, 10
        %s559 = sadd.s32 %s557, %s558
        %s560 = smul.addr %s559, 4
        %s561 = scalar_lea.vmem %s4, %s560
      $region48: #{tpu_custom_call.1} parent=43 // pred_fallthru
        _
    $region44: #{tpu_custom_call.1} parent=5 // pred_fallthru
      _
  $region6: #{tpu_custom_call.1} parent=0 // loop_footer
    %s14 = sadd.s32 1, %s10
  $region7: #{tpu_custom_call.1} parent=0 // loop_footer_branch
    %9 = sbr.rel target = $region3
  $region8: #{tpu_custom_call.1} parent=0 // loop_exit
    _

</llo_original>
